<compile_context>
chip_gen: v7x
topology: tpu7x:2x2x1
jax: 0.10.0
libtpu: 0.0.40
codegen_flags: <defaults>
</compile_context>

<pallas_src>
import functools

import jax
import jax.numpy as jnp
from jax.experimental import pallas as pl
from jax.experimental.pallas import tpu as pltpu


def _round_up(x: int, m: int) -> int:
    return ((x + m - 1) // m) * m


# ----------------------------------------------------------------------------
# Pallas kernel: nearest-codebook-entry quantisation for one (C, tile_t) tile.
# ----------------------------------------------------------------------------
def _vq_kernel(x_ref, e_ref, esq_ref, q_ref, counts_ref, *, t_real, tile_t, k):
    """x_ref: (1, C, tile_t)   e_ref: (K, C)   esq_ref: (K, 1)
       -> q_ref: (1, C, tile_t),  counts_ref: (1, 1, K, 1)."""
    x = x_ref[0].astype(jnp.float32)          # (C, tile_t)
    e = e_ref[...].astype(jnp.float32)        # (K, C)
    e_sq = esq_ref[...]                       # (K, 1) = ||e_k||^2

    # Distance up to the per-column constant ||x||^2 (doesn't change argmin):
    #   d'_{k,t} = ||e_k||^2 - 2 e_k . x_t                     -> (K, tile_t)
    xe = jax.lax.dot_general(e, x, (((1,), (0,)), ((), ())),
                             preferred_element_type=jnp.float32)   # (K, tile_t)  MXU
    dist = e_sq - 2.0 * xe

    # argmin over K (first minimal index, matching torch.argmin tie-breaking)
    min_val = jnp.min(dist, axis=0, keepdims=True)                   # (1, tile_t)
    iota_k = jax.lax.broadcasted_iota(jnp.int32, dist.shape, 0)      # (K, tile_t)
    idx = jnp.min(jnp.where(dist == min_val, iota_k, k),
                  axis=0, keepdims=True)                             # (1, tile_t)
    onehot = (iota_k == idx).astype(jnp.float32)                     # (K, tile_t)

    # Mask padded time columns so they never contribute to counts / q.
    col = (pl.program_id(1) * tile_t
           + jax.lax.broadcasted_iota(jnp.int32, (1, tile_t), 1))    # (1, tile_t)
    onehot = jnp.where(col < t_real, onehot, 0.0)

    # Quantised vectors: q = E^T @ onehot  -> (C, tile_t)  (MXU)
    q = jax.lax.dot_general(e, onehot, (((0,), (0,)), ((), ())),
                            preferred_element_type=jnp.float32)
    q_ref[0] = q.astype(q_ref.dtype)

    # Per-tile code-usage counts (replaces the (N, K) one-hot HBM output).
    counts = jnp.sum(onehot, axis=1, keepdims=True)                  # (K, 1)
    counts_ref[...] = counts.reshape(1, 1, k, 1)


def _vq_quantise(z_bct, codebook, *, max_tile_t=512):
    """z_bct: (B, C, T); codebook: (K, C).
       Returns (q_bct (B, C, T), code_counts (K,))."""
    b, c, t = z_bct.shape
    k = codebook.shape[0]

    tile_t = min(max_tile_t, _round_up(t, 128))      # multiple of 128 lanes
    t_pad = _round_up(t, tile_t)
    n_tiles = t_pad // tile_t
    z_in = z_bct if t_pad == t else jnp.pad(z_bct, ((0, 0), (0, 0), (0, t_pad - t)))

    e_sq = jnp.sum(codebook.astype(jnp.float32) ** 2, axis=-1, keepdims=True)  # (K, 1)

    kernel = functools.partial(_vq_kernel, t_real=t, tile_t=tile_t, k=k)

    # Rough per-step VMEM budget (x + q double-buffered, dist/onehot/iota temps,
    # resident codebook); raise the scoped-VMEM default if a big tile needs it.
    est = 4 * (4 * tile_t * c + 6 * tile_t * k + k * (c + 4))
    vmem_limit = int(min(max(2 * est, 32 * 1024 * 1024), 56 * 1024 * 1024))

    q_pad, counts = pl.pallas_call(
        kernel,
        out_shape=(jax.ShapeDtypeStruct((b, c, t_pad), z_bct.dtype),
                   jax.ShapeDtypeStruct((b, n_tiles, k, 1), jnp.float32)),
        grid_spec=pltpu.PrefetchScalarGridSpec(
            num_scalar_prefetch=0,
            grid=(b, n_tiles),
            in_specs=[
                pl.BlockSpec((1, c, tile_t), lambda bi, ti: (bi, 0, ti)),  # z tile
                pl.BlockSpec((k, c), lambda bi, ti: (0, 0)),               # codebook (resident)
                pl.BlockSpec((k, 1), lambda bi, ti: (0, 0)),               # ||e_k||^2 (resident)
            ],
            out_specs=[
                pl.BlockSpec((1, c, tile_t), lambda bi, ti: (bi, 0, ti)),      # quantised
                pl.BlockSpec((1, 1, k, 1), lambda bi, ti: (bi, ti, 0, 0)),     # code counts
            ],
        ),
        compiler_params=pltpu.CompilerParams(
            dimension_semantics=("parallel", "parallel"),
            vmem_limit_bytes=vmem_limit),
    )(z_in, codebook, e_sq)

    q_bct = q_pad[:, :, :t]
    code_counts = jnp.sum(counts, axis=(0, 1, 3))    # (K,)  tiny reduction in XLA
    return q_bct, code_counts


# ----------------------------------------------------------------------------
# UNetQuantiserEMA forward (inference path)
# ----------------------------------------------------------------------------
class UNetQuantiserEMA:
    def __init__(self, codebooks, reservoir_downsampling_rates=None,
                 jitter_for_training=False, max_tile_t=512):
        # codebooks: list of (K_i, C_i) float32 arrays (EMACodebook embeddings)
        self.codebooks = [jnp.asarray(cb) for cb in codebooks]
        self.reservoir_downsampling_rates = (
            [1] * len(codebooks) if reservoir_downsampling_rates is None
            else reservoir_downsampling_rates)
        self.jitter_for_training = jitter_for_training
        self.max_tile_t = max_tile_t
        # TODO(synk): vq_jitter (torch.multinomial at train time) and the EMA
        # reservoir / codebook-update methods are training-only and not
        # implemented in this inference kernel.

    def __call__(self, list_z_bct):
        list_perplexity, list_q_bct, list_zq_bct = [], [], []
        for codebook, z_bct in zip(self.codebooks, list_z_bct):
            b, _, t = z_bct.shape
            q_bct, counts = _vq_quantise(z_bct, codebook, max_tile_t=self.max_tile_t)

            # perplexity = exp(-sum(p_mean * log(p_mean + eps))), p_mean from counts
            avg_p = counts / float(b * t)                       # (K,)
            perp = jnp.exp(-jnp.sum(avg_p * jnp.log(avg_p + 1e-10)))

            # straight-through estimator: zq = z + stopgrad(q - z)
            zq_bct = z_bct + jax.lax.stop_gradient(q_bct - z_bct)

            list_perplexity.append(perp)
            list_q_bct.append(q_bct)
            list_zq_bct.append(zq_bct)
        return list_zq_bct, list_q_bct, list_perplexity


# ----------------------------------------------------------------------------
# Reference (pure jnp) for a quick self-check
# ----------------------------------------------------------------------------
def _reference_quantise(z_bct, codebook):
    b, c, t = z_bct.shape
    k = codebook.shape[0]
    x = jnp.transpose(z_bct, (0, 2, 1)).reshape(b * t, c).astype(jnp.float32)
    e = codebook.astype(jnp.float32)
    d = (jnp.sum(x * x, -1, keepdims=True)
         - 2.0 * x @ e.T
         + jnp.sum(e * e, -1)[None, :])
    idx = jnp.argmin(d, axis=-1)
    onehot = jax.nn.one_hot(idx, k, dtype=jnp.float32)
    q_btc = (onehot @ e).reshape(b, t, c)
    q_bct = jnp.transpose(q_btc, (0, 2, 1))
    avg_p = jnp.mean(onehot, axis=0)
    perp = jnp.exp(-jnp.sum(avg_p * jnp.log(avg_p + 1e-10)))
    return q_bct, perp


if __name__ == "__main__":
    key = jax.random.PRNGKey(0)
    k_z0, k_z1, k_e0, k_e1 = jax.random.split(key, 4)

    # Two quantisers in the stack (small synthetic configs):
    #   quantiser 0: embedding_dim C0=32, num_embeddings K0=128
    #   quantiser 1: embedding_dim C1=16, num_embeddings K1=64
    B, T = 2, 16
    C0, K0 = 32, 128
    C1, K1 = 16, 64

    z0_bct = jax.random.normal(k_z0, (B, C0, T), dtype=jnp.float32)
    z1_bct = jax.random.normal(k_z1, (B, C1, T), dtype=jnp.float32)
    codebook0 = jax.random.normal(k_e0, (K0, C0), dtype=jnp.float32)
    codebook1 = jax.random.normal(k_e1, (K1, C1), dtype=jnp.float32)

    model = UNetQuantiserEMA([codebook0, codebook1])

    list_zq, list_q, list_perp = model([z0_bct, z1_bct])
    jax.block_until_ready(list_zq)
    jax.block_until_ready(list_q)
    jax.block_until_ready(list_perp)

    # correctness check vs pure-JAX reference
    for z, cb, q, zq, perp in zip([z0_bct, z1_bct], [codebook0, codebook1],
                                  list_q, list_zq, list_perp):
        q_ref, perp_ref = _reference_quantise(z, cb)
        assert jnp.allclose(q, q_ref, atol=1e-5), "quantised values mismatch"
        assert jnp.allclose(zq, q_ref, atol=1e-5), "straight-through values mismatch"
        assert jnp.allclose(perp, perp_ref, atol=1e-4, rtol=1e-5), "perplexity mismatch"

    print("KERNEL_OK")
</pallas_src>

<mosaic_0001>
module attributes {stable_mosaic.version = 11 : i64} {
  func.func @_vq_kernel(%arg0: i32, %arg1: i32, %arg2: memref<1x32x128xf32, #tpu.memory_space<vmem>>, %arg3: memref<128x32xf32, #tpu.memory_space<vmem>>, %arg4: memref<128x1xf32, #tpu.memory_space<vmem>>, %arg5: memref<1x32x128xf32, #tpu.memory_space<vmem>>, %arg6: memref<1x1x128x1xf32, #tpu.memory_space<vmem>>) attributes {dimension_semantics = [#tpu.dimension_semantics<parallel>, #tpu.dimension_semantics<parallel>], iteration_bounds = array<i64: 2, 1>, scalar_prefetch = 0 : i64, scratch_operands = 0 : i64, tpu.core_type = #tpu.core_type<tc>, window_params = [{transform_indices = @transform_0, window_bounds = array<i64: 1, 32, 128>}, {pipeline_mode = #tpu.pipeline_mode<synchronous>, transform_indices = @transform_1, window_bounds = array<i64: 128, 32>}, {pipeline_mode = #tpu.pipeline_mode<synchronous>, transform_indices = @transform_2, window_bounds = array<i64: 128, 1>}, {transform_indices = @transform_3, window_bounds = array<i64: 1, 32, 128>}, {transform_indices = @transform_4, window_bounds = array<i64: 1, 1, 128, 1>}]} {
    %c0 = arith.constant 0 : index
    %c0_0 = arith.constant 0 : index
    %c0_1 = arith.constant 0 : index
    %0 = vector.load %arg2[%c0, %c0_0, %c0_1] : memref<1x32x128xf32, #tpu.memory_space<vmem>>, vector<1x32x128xf32>
    %1 = vector.shape_cast %0 : vector<1x32x128xf32> to vector<32x128xf32>
    %c0_2 = arith.constant 0 : index
    %c0_3 = arith.constant 0 : index
    %2 = vector.load %arg3[%c0_2, %c0_3] : memref<128x32xf32, #tpu.memory_space<vmem>>, vector<128x32xf32>
    %c0_4 = arith.constant 0 : index
    %c0_5 = arith.constant 0 : index
    %3 = vector.load %arg4[%c0_4, %c0_5] : memref<128x1xf32, #tpu.memory_space<vmem>>, vector<128x1xf32>
    %cst = arith.constant dense<0.000000e+00> : vector<128x128xf32>
    %4 = tpu.matmul %2, %1, %cst {dimension_numbers = #tpu.dot_dimension_numbers<[1], [0], [0], [1], [0, 0, 1, 1], [], []>} : vector<128x32xf32>, vector<32x128xf32>, vector<128x128xf32> -> vector<128x128xf32>
    %cst_6 = arith.constant 2.000000e+00 : f32
    %5 = vector.broadcast %cst_6 : f32 to vector<128x128xf32>
    %6 = arith.mulf %5, %4 : vector<128x128xf32>
    %7 = vector.broadcast %3 : vector<128x1xf32> to vector<128x128xf32>
    %8 = arith.subf %7, %6 : vector<128x128xf32>
    %cst_7 = arith.constant dense<0x7F800000> : vector<128xf32>
    %9 = vector.multi_reduction <minimumf>, %8, %cst_7 [0] : vector<128x128xf32> to vector<128xf32>
    %10 = vector.shape_cast %9 : vector<128xf32> to vector<1x128xf32>
    %11 = tpu.iota {dimensions = array<i32: 0>} : vector<128x128xi32>
    %12 = vector.broadcast %10 : vector<1x128xf32> to vector<128x128xf32>
    %13 = arith.cmpf oeq, %8, %12 : vector<128x128xf32>
    %c128_i32 = arith.constant 128 : i32
    %14 = vector.broadcast %c128_i32 : i32 to vector<128x128xi32>
    %15 = arith.select %13, %11, %14 : vector<128x128xi1>, vector<128x128xi32>
    %cst_8 = arith.constant dense<2147483647> : vector<128xi32>
    %16 = vector.multi_reduction <minsi>, %15, %cst_8 [0] : vector<128x128xi32> to vector<128xi32>
    %17 = vector.shape_cast %16 : vector<128xi32> to vector<1x128xi32>
    %18 = vector.broadcast %17 : vector<1x128xi32> to vector<128x128xi32>
    %19 = arith.cmpi eq, %11, %18 : vector<128x128xi32>
    %20 = arith.extui %19 : vector<128x128xi1> to vector<128x128xi32>
    %21 = arith.sitofp %20 : vector<128x128xi32> to vector<128x128xf32>
    %c128_i32_9 = arith.constant 128 : i32
    %22 = arith.muli %arg1, %c128_i32_9 : i32
    %23 = tpu.iota {dimensions = array<i32: 1>} : vector<1x128xi32>
    %24 = vector.broadcast %22 : i32 to vector<1x128xi32>
    %25 = arith.addi %24, %23 : vector<1x128xi32>
    %c16_i32 = arith.constant 16 : i32
    %26 = vector.broadcast %c16_i32 : i32 to vector<1x128xi32>
    %27 = arith.cmpi slt, %25, %26 : vector<1x128xi32>
    %cst_10 = arith.constant 0.000000e+00 : f32
    %28 = vector.shape_cast %27 : vector<1x128xi1> to vector<1x128xi1>
    %29 = vector.broadcast %28 : vector<1x128xi1> to vector<128x128xi1>
    %30 = vector.broadcast %cst_10 : f32 to vector<128x128xf32>
    %31 = arith.select %29, %21, %30 : vector<128x128xi1>, vector<128x128xf32>
    %cst_11 = arith.constant dense<0.000000e+00> : vector<32x128xf32>
    %32 = tpu.matmul %2, %31, %cst_11 {dimension_numbers = #tpu.dot_dimension_numbers<[0], [0], [1], [1], [0, 1, 1, 1], [], []>} : vector<128x32xf32>, vector<128x128xf32>, vector<32x128xf32> -> vector<32x128xf32>
    %c0_12 = arith.constant 0 : index
    %c0_13 = arith.constant 0 : index
    %c0_14 = arith.constant 0 : index
    %33 = vector.load %arg5[%c0_12, %c0_13, %c0_14] : memref<1x32x128xf32, #tpu.memory_space<vmem>>, vector<1x32x128xf32>
    %34 = vector.shape_cast %33 : vector<1x32x128xf32> to vector<32x128xf32>
    %35 = vector.shape_cast %32 : vector<32x128xf32> to vector<1x32x128xf32>
    tpu.vector_store %arg5[%c0_12, %c0_13, %c0_14], %35 {strides = array<i32>} : memref<1x32x128xf32, #tpu.memory_space<vmem>>, vector<1x32x128xf32>,
    %cst_15 = arith.constant dense<0.000000e+00> : vector<128xf32>
    %36 = vector.multi_reduction <add>, %31, %cst_15 [1] : vector<128x128xf32> to vector<128xf32>
    %37 = vector.shape_cast %36 : vector<128xf32> to vector<128x1xf32>
    %38 = vector.shape_cast %37 : vector<128x1xf32> to vector<1x1x128x1xf32>
    %c0_16 = arith.constant 0 : index
    %c0_17 = arith.constant 0 : index
    %c0_18 = arith.constant 0 : index
    %c0_19 = arith.constant 0 : index
    %39 = vector.load %arg6[%c0_16, %c0_17, %c0_18, %c0_19] : memref<1x1x128x1xf32, #tpu.memory_space<vmem>>, vector<1x1x128x1xf32>
    tpu.vector_store %arg6[%c0_16, %c0_17, %c0_18, %c0_19], %38 {strides = array<i32>} : memref<1x1x128x1xf32, #tpu.memory_space<vmem>>, vector<1x1x128x1xf32>,
    return
  }
  func.func @transform_0(%arg0: i32, %arg1: i32) -> (i32, i32, i32) {
    %c0_i32 = arith.constant 0 : i32
    %c0_i32_0 = arith.constant 0 : i32
    return %arg0, %c0_i32, %arg1 : i32, i32, i32
  }
  func.func @transform_1(%arg0: i32, %arg1: i32) -> (i32, i32) {
    %c0_i32 = arith.constant 0 : i32
    %c0_i32_0 = arith.constant 0 : i32
    %c0_i32_1 = arith.constant 0 : i32
    return %c0_i32, %c0_i32_0 : i32, i32
  }
  func.func @transform_2(%arg0: i32, %arg1: i32) -> (i32, i32) {
    %c0_i32 = arith.constant 0 : i32
    %c0_i32_0 = arith.constant 0 : i32
    %c0_i32_1 = arith.constant 0 : i32
    return %c0_i32, %c0_i32_0 : i32, i32
  }
  func.func @transform_3(%arg0: i32, %arg1: i32) -> (i32, i32, i32) {
    %c0_i32 = arith.constant 0 : i32
    %c0_i32_0 = arith.constant 0 : i32
    return %arg0, %c0_i32, %arg1 : i32, i32, i32
  }
  func.func @transform_4(%arg0: i32, %arg1: i32) -> (i32, i32, i32, i32) {
    %c0_i32 = arith.constant 0 : i32
    %c0_i32_0 = arith.constant 0 : i32
    %c0_i32_1 = arith.constant 0 : i32
    return %arg0, %arg1, %c0_i32, %c0_i32_0 : i32, i32, i32, i32
  }
}

</mosaic_0001>

<llo_original>
// kernel: tpu_custom_call.1
$region0: #{tpu_custom_call.1}
  #allocation0 [shape = 'u32[]', space=smem, size = 0x4, offset = 0x4, fixed_abs, tag = 'smem constant byte address 0x4 - core index']
  #allocation1 [shape = 'u32[144,128]{1,0:T(1,128)}', space=vmem, size = 0x12000, scoped, tag = 'internal scratch']
  %s0 = inlined_call_operand.vmem [shape: f32[2,32,128], index: 0, kind: input, shape index: {}]
  %s1 = inlined_call_operand.vmem [shape: f32[128,32], index: 1, kind: input, shape index: {}]
  %s2 = inlined_call_operand.vmem [shape: f32[128,1], index: 2, kind: input, shape index: {}]
  %s3 = inlined_call_operand.hbm [shape: f32[2,32,128], index: 3, kind: output, shape index: {0}]
  %s4 = inlined_call_operand.vmem [shape: f32[2,1,128,1], index: 4, kind: output, shape index: {1}]
  %5 = xla_tuple %s3, %s4
  %s6 = sld [smem:[#allocation0]]
  $region53: #{tpu_custom_call.1} parent=0
    _
  %s8 = ssub.s32 1, %s6
  %s9 = scalar_select 0, %s8, %s6
  $region1: #{tpu_custom_call.1} parent=0
    #allocation2 [shape = 'u8[32768]{0}', space=vmem, size = 0x8000, scoped, tag = 'output window, operand 0']
    #allocation3 [shape = 's32[2]{0}', space=sflag, size = 0x8, scoped, tag = 'scoped memory for tpu_custom_call.1']
    %10 = vsyncpa [#allocation3], 0
    %s11 = scalar_lea.sflag [#allocation3], 1
    %12 = vsyncpa %s11, 0
    loop: start=0, step=1, limit=4
    $region2: #{tpu_custom_call.1} parent=1 // loop_pre_header
      _
    $region3: #{tpu_custom_call.1} parent=1 // loop_header
      %s14 = sphi 0, %s18
      %p15 = scmp.ge.s32.totalorder %s14, 4
      %s21 = sphi 0, %s33
      %s22 = sphi 0, %s29
      %s23 = sphi 0, %s21
      %s24 = sphi 0, %s22
      %s25 = sphi 0, %s23
      %s26 = sphi 0, %s24
      %s38 = sphi 0, %s40
      %s41 = sphi 0, %s38
      %s42 = sphi 0, %s41
      %s58 = sphi 0, %s42
      %s62 = sphi 0, %s62
      %s64 = sphi 0, %s62
      %s65 = sphi 0, %s64
      %s79 = sphi 0, %s65
      %s83 = sphi 0, %s83
      %s85 = sphi 0, %s83
      %s86 = sphi 0, %s85
      %s100 = sphi 0, %s86
      %s108 = sphi 0, %s110
      %s111 = sphi 0, %s108
      %s112 = sphi 0, %s111
      %s128 = sphi 0, %s112
      %s136 = sphi 0, %s138
      %s139 = sphi 0, %s136
      %s140 = sphi 0, %s139
      %s156 = sphi 0, %s140
    $region4: #{tpu_custom_call.1} parent=1 // loop_header_branch
      %17 = sbr.rel (%p15) target = $region8
    $region5: #{tpu_custom_call.1} parent=1 // loop_body
      %s19 = ssub.s32 %s14, 1
      %s20 = ssub.s32 %s14, 2
      %s27 = sadd.s32 1, %s22
      %p28 = scmp.ge.s32.totalorder %s27, 1
      %s29 = scalar_select %p28, 0, %s27
      %s30 = sadd.s32 1, %s21
      %s31 = scalar_select %p28, %s30, %s21
      %p32 = scmp.ge.s32.totalorder %s31, 2
      %s33 = scalar_select %p32, 0, %s31
      %s34 = ssub.s32 %s21, %s33
      %s35 = ssub.s32 %s22, %s29
      %s36 = sor.u32 %s34, %s35
      %p37 = scmp.eq.s32.totalorder %s36, 0
      %s39 = sadd.s32 %s38, 1
      %s40 = scalar_select %p37, %s38, %s39
      %p43 = pneg %p37
      %p44 = scmp.eq.s32.totalorder %s14, 1
      %p45 = por %p43, %p44
      %p46 = scmp.ne.s32.totalorder %s38, %s41
      %p47 = scmp.eq.s32.totalorder %s14, 0
      %p48 = por %p46, %p47
      %p49 = scmp.ne.s32.totalorder %s38, %s41
      %p50 = scmp.eq.s32.totalorder %s19, 1
      %p51 = por %p49, %p50
      %p52 = scmp.ne.s32.totalorder %s41, %s42
      %p53 = scmp.eq.s32.totalorder %s19, 0
      %p54 = por %p52, %p53
      %p55 = scmp.ne.s32.totalorder %s41, %s42
      %p56 = scmp.eq.s32.totalorder %s20, 1
      %p57 = por %p55, %p56
      %p59 = scmp.ne.s32.totalorder %s42, %s58
      %p60 = scmp.eq.s32.totalorder %s20, 0
      %p61 = por %p59, %p60
      %s63 = sadd.s32 %s62, 1
      %p66 = scmp.eq.s32.totalorder %s14, 1
      %p67 = scmp.ne.s32.totalorder %s62, %s64
      %p68 = scmp.eq.s32.totalorder %s14, 0
      %p69 = por %p67, %p68
      %p70 = scmp.ne.s32.totalorder %s62, %s64
      %p71 = scmp.eq.s32.totalorder %s19, 1
      %p72 = por %p70, %p71
      %p73 = scmp.ne.s32.totalorder %s64, %s65
      %p74 = scmp.eq.s32.totalorder %s19, 0
      %p75 = por %p73, %p74
      %p76 = scmp.ne.s32.totalorder %s64, %s65
      %p77 = scmp.eq.s32.totalorder %s20, 1
      %p78 = por %p76, %p77
      %p80 = scmp.ne.s32.totalorder %s65, %s79
      %p81 = scmp.eq.s32.totalorder %s20, 0
      %p82 = por %p80, %p81
      %s84 = sadd.s32 %s83, 1
      %p87 = scmp.eq.s32.totalorder %s14, 1
      %p88 = scmp.ne.s32.totalorder %s83, %s85
      %p89 = scmp.eq.s32.totalorder %s14, 0
      %p90 = por %p88, %p89
      %p91 = scmp.ne.s32.totalorder %s83, %s85
      %p92 = scmp.eq.s32.totalorder %s19, 1
      %p93 = por %p91, %p92
      %p94 = scmp.ne.s32.totalorder %s85, %s86
      %p95 = scmp.eq.s32.totalorder %s19, 0
      %p96 = por %p94, %p95
      %p97 = scmp.ne.s32.totalorder %s85, %s86
      %p98 = scmp.eq.s32.totalorder %s20, 1
      %p99 = por %p97, %p98
      %p101 = scmp.ne.s32.totalorder %s86, %s100
      %p102 = scmp.eq.s32.totalorder %s20, 0
      %p103 = por %p101, %p102
      %s104 = ssub.s32 %s21, %s33
      %s105 = ssub.s32 %s22, %s29
      %s106 = sor.u32 %s104, %s105
      %p107 = scmp.eq.s32.totalorder %s106, 0
      %s109 = sadd.s32 %s108, 1
      %s110 = scalar_select %p107, %s108, %s109
      %p113 = pneg %p107
      %p114 = scmp.eq.s32.totalorder %s14, 1
      %p115 = por %p113, %p114
      %p116 = scmp.ne.s32.totalorder %s108, %s111
      %p117 = scmp.eq.s32.totalorder %s14, 0
      %p118 = por %p116, %p117
      %p119 = scmp.ne.s32.totalorder %s108, %s111
      %p120 = scmp.eq.s32.totalorder %s19, 1
      %p121 = por %p119, %p120
      %p122 = scmp.ne.s32.totalorder %s111, %s112
      %p123 = scmp.eq.s32.totalorder %s19, 0
      %p124 = por %p122, %p123
      %p125 = scmp.ne.s32.totalorder %s111, %s112
      %p126 = scmp.eq.s32.totalorder %s20, 1
      %p127 = por %p125, %p126
      %p129 = scmp.ne.s32.totalorder %s112, %s128
      %p130 = scmp.eq.s32.totalorder %s20, 0
      %p131 = por %p129, %p130
      %s132 = ssub.s32 %s21, %s33
      %s133 = ssub.s32 %s22, %s29
      %s134 = sor.u32 %s132, %s133
      %p135 = scmp.eq.s32.totalorder %s134, 0
      %s137 = sadd.s32 %s136, 1
      %s138 = scalar_select %p135, %s136, %s137
      %p141 = pneg %p135
      %p142 = scmp.eq.s32.totalorder %s14, 1
      %p143 = por %p141, %p142
      %p144 = scmp.ne.s32.totalorder %s136, %s139
      %p145 = scmp.eq.s32.totalorder %s14, 0
      %p146 = por %p144, %p145
      %p147 = scmp.ne.s32.totalorder %s136, %s139
      %p148 = scmp.eq.s32.totalorder %s19, 1
      %p149 = por %p147, %p148
      %p150 = scmp.ne.s32.totalorder %s139, %s140
      %p151 = scmp.eq.s32.totalorder %s19, 0
      %p152 = por %p150, %p151
      %p153 = scmp.ne.s32.totalorder %s139, %s140
      %p154 = scmp.eq.s32.totalorder %s20, 1
      %p155 = por %p153, %p154
      %p157 = scmp.ne.s32.totalorder %s140, %s156
      %p158 = scmp.eq.s32.totalorder %s20, 0
      %p159 = por %p157, %p158
      %p160 = scmp.le.s32.totalorder 1, %s14
      %p161 = scmp.lt.s32.totalorder %s14, 3
      %p162 = pnand %p160, %p161
      %p163 = pneg %p162
      // Predicated region
      $region9: #{tpu_custom_call.1} parent=5 // pred_check
        _
      $region10: #{tpu_custom_call.1} parent=5 // pred_check_branch
        %165 = sbr.rel (%p162) target = $region12
      $region11: #{tpu_custom_call.1} parent=5 // pred_region
        %s166 = ssub.s32 %s14, 1
        // Predicated region
        $region13: #{tpu_custom_call.1} parent=11 // pred_check
          %p167 = pneg %p75
        $region14: #{tpu_custom_call.1} parent=11 // pred_check_branch
          %169 = sbr.rel (%p167) target = $region16
        $region15: #{tpu_custom_call.1} parent=11 // pred_region
          _
        $region16: #{tpu_custom_call.1} parent=11 // pred_fallthru
          _
        // Predicated region
        $region17: #{tpu_custom_call.1} parent=11 // pred_check
          %p170 = pneg %p96
        $region18: #{tpu_custom_call.1} parent=11 // pred_check_branch
          %172 = sbr.rel (%p170) target = $region20
        $region19: #{tpu_custom_call.1} parent=11 // pred_region
          _
        $region20: #{tpu_custom_call.1} parent=11 // pred_fallthru
          _
      $region12: #{tpu_custom_call.1} parent=5 // pred_fallthru
        _
      %p173 = scmp.lt.s32.totalorder %s14, 2
      // Predicated region
      $region21: #{tpu_custom_call.1} parent=5 // pred_check
        %p174 = pneg %p173
      $region22: #{tpu_custom_call.1} parent=5 // pred_check_branch
        %176 = sbr.rel (%p174) target = $region24
      $region23: #{tpu_custom_call.1} parent=5 // pred_region
        // Predicated region
        $region25: #{tpu_custom_call.1} parent=23 // pred_check
          %p177 = pneg %p48
        $region26: #{tpu_custom_call.1} parent=23 // pred_check_branch
          %179 = sbr.rel (%p177) target = $region28
        $region27: #{tpu_custom_call.1} parent=23 // pred_region
          %p180 = scmp.lt.s32.totalorder %s21, 1
          %s181 = scalar_select %p180, %s21, 1
          %p182 = scmp.lt.s32.totalorder %s22, 0
          %s183 = scalar_select %p182, %s22, 0
          %s184 = smul.addr %s181, 4
          %s185 = sadd.s32 %s183, %s184
          %s186 = smul.addr %s185, 8
          %s187 = scalar_lea.vmem %s0, %s186
        $region28: #{tpu_custom_call.1} parent=23 // pred_fallthru
          _
      $region24: #{tpu_custom_call.1} parent=5 // pred_fallthru
        _
      %p188 = scmp.le.s32.totalorder 1, %s14
      %p189 = scmp.lt.s32.totalorder %s14, 3
      %p190 = pnand %p188, %p189
      %p191 = pneg %p190
      // Predicated region
      $region29: #{tpu_custom_call.1} parent=5 // pred_check
        _
      $region30: #{tpu_custom_call.1} parent=5 // pred_check_branch
        %193 = sbr.rel (%p190) target = $region32
      $region31: #{tpu_custom_call.1} parent=5 // pred_region
        %s194 = ssub.s32 %s14, 1
        %p195 = scmp.lt.s32.totalorder %s23, 1
        %s196 = scalar_select %p195, %s23, 1
        %p197 = scmp.lt.s32.totalorder %s24, 0
        %s198 = scalar_select %p197, %s24, 0
        %s199 = smul.addr %s196, 4
        %s200 = sadd.s32 %s198, %s199
        %s201 = smul.addr %s200, 8
        %s202 = scalar_lea.vmem %s0, %s201
        %p203 = pneg %p54
        %p204 = pneg %p51
        %p205 = pneg %p75
        %p206 = pneg %p72
        %p207 = pneg %p96
        %p208 = pneg %p93
        %p209 = pneg %p124
        %p210 = pneg %p121
        %s211 = sand.u32 %s111, 1
        %s212 = scalar_lea.sflag [#allocation3], %s211
        %s213 = sand.u32 %s111, 1
        %s214 = smul.addr %s213, 32
        %s215 = scalar_lea.vmem [#allocation2], %s214
        %p216 = pneg %p152
        %p217 = pneg %p149
        %p218 = scmp.lt.s32.totalorder %s23, 1
        %s219 = scalar_select %p218, %s23, 1
        %p220 = scmp.lt.s32.totalorder %s24, 0
        %s221 = scalar_select %p220, %s24, 0
        %s222 = smul.addr %s221, 16
        %s223 = smul.addr %s219, 16
        %s224 = sadd.s32 %s222, %s223
        %s225 = smul.addr %s224, 8
        %s226 = scalar_lea.vmem %s4, %s225
        %p227 = scmp.lt.s32.totalorder %s23, 1
        %s228 = scalar_select %p227, %s23, 1
        %p229 = scmp.lt.s32.totalorder %s24, 0
        %s230 = scalar_select %p229, %s24, 0
        %s231 = smul.addr %s228, 4
        %s232 = sadd.s32 %s230, %s231
        %s233 = smul.addr %s232, 8
        %s234 = scalar_lea.vmem %s0, %s233
        %p235 = scmp.lt.s32.totalorder %s23, 1
        %s236 = scalar_select %p235, %s23, 1
        %p237 = scmp.lt.s32.totalorder %s24, 0
        %s238 = scalar_select %p237, %s24, 0
        %s239 = smul.addr %s238, 16
        %s240 = smul.addr %s236, 16
        %s241 = sadd.s32 %s239, %s240
        %s242 = smul.addr %s241, 8
        %s243 = scalar_lea.vmem %s4, %s242
        %v244 = vld [vmem:[%s234] sm:$0xff]
        %v245 = vld [vmem:[%s234 + $0x8] sm:$0xff]
        %v246 = vld [vmem:[%s234 + $0x10] sm:$0xff]
        %v247 = vld [vmem:[%s234 + $0x18] sm:$0xff]
        %v248 = vld [vmem:[%s1] sm:$0xff]
        %v249 = vld [vmem:[%s1 + $0x8] sm:$0xff]
        %v250 = vld [vmem:[%s1 + $0x10] sm:$0xff]
        %v251 = vld [vmem:[%s1 + $0x18] sm:$0xff]
        %v252 = vld [vmem:[%s1 + $0x20] sm:$0xff]
        %v253 = vld [vmem:[%s1 + $0x28] sm:$0xff]
        %v254 = vld [vmem:[%s1 + $0x30] sm:$0xff]
        %v255 = vld [vmem:[%s1 + $0x38] sm:$0xff]
        %v256 = vld [vmem:[%s1 + $0x40] sm:$0xff]
        %v257 = vld [vmem:[%s1 + $0x48] sm:$0xff]
        %v258 = vld [vmem:[%s1 + $0x50] sm:$0xff]
        %v259 = vld [vmem:[%s1 + $0x58] sm:$0xff]
        %v260 = vld [vmem:[%s1 + $0x60] sm:$0xff]
        %v261 = vld [vmem:[%s1 + $0x68] sm:$0xff]
        %v262 = vld [vmem:[%s1 + $0x70] sm:$0xff]
        %v263 = vld [vmem:[%s1 + $0x78] sm:$0xff]
        %v264 = vld [vmem:[%s2] sm:$0xff]
        %v265 = vld [vmem:[%s2 + $0x8] sm:$0xff]
        %v266 = vld [vmem:[%s2 + $0x10] sm:$0xff]
        %v267 = vld [vmem:[%s2 + $0x18] sm:$0xff]
        %v268 = vld [vmem:[%s2 + $0x20] sm:$0xff]
        %v269 = vld [vmem:[%s2 + $0x28] sm:$0xff]
        %v270 = vld [vmem:[%s2 + $0x30] sm:$0xff]
        %v271 = vld [vmem:[%s2 + $0x38] sm:$0xff]
        %v272 = vld [vmem:[%s2 + $0x40] sm:$0xff]
        %v273 = vld [vmem:[%s2 + $0x48] sm:$0xff]
        %v274 = vld [vmem:[%s2 + $0x50] sm:$0xff]
        %v275 = vld [vmem:[%s2 + $0x58] sm:$0xff]
        %v276 = vld [vmem:[%s2 + $0x60] sm:$0xff]
        %v277 = vld [vmem:[%s2 + $0x68] sm:$0xff]
        %v278 = vld [vmem:[%s2 + $0x70] sm:$0xff]
        %v279 = vld [vmem:[%s2 + $0x78] sm:$0xff]
        %vm280 = vcmask 261120
        %v282 = vsel %vm280, %v248, 0
        %v285 = vsel %vm280, %v249, 0
        %v288 = vsel %vm280, %v250, 0
        %v291 = vsel %vm280, %v251, 0
        %v294 = vsel %vm280, %v252, 0
        %v297 = vsel %vm280, %v253, 0
        %v300 = vsel %vm280, %v254, 0
        %v303 = vsel %vm280, %v255, 0
        %v306 = vsel %vm280, %v256, 0
        %v309 = vsel %vm280, %v257, 0
        %v312 = vsel %vm280, %v258, 0
        %v315 = vsel %vm280, %v259, 0
        %v318 = vsel %vm280, %v260, 0
        %v321 = vsel %vm280, %v261, 0
        %v324 = vsel %vm280, %v262, 0
        %v327 = vsel %vm280, %v263, 0
        %329 = vmatprep.subr.mxu0 0.0
        %330 = vmatpush1.msra.mxu0 %v244
        %331 = vmatprep.subr.mxu0 0.0
        %332 = vmatpush1.msra.mxu0 %v245
        %333 = vmatprep.subr.mxu0 0.0
        %334 = vmatpush1.msra.mxu0 %v246
        %335 = vmatprep.subr.mxu0 0.0
        %336 = vmatpush1.msra.mxu0 %v247
        %337 = vmatprep.subr.mxu0 0.0
        %338 = vmatpush1.msra.mxu0 0.0
        %339 = vmatprep.subr.mxu0 0.0
        %340 = vmatpush1.msra.mxu0 0.0
        %341 = vmatprep.subr.mxu0 0.0
        %342 = vmatpush1.msra.mxu0 0.0
        %343 = vmatprep.subr.mxu0 0.0
        %344 = vmatpush1.msra.mxu0 0.0
        %345 = vmatprep.subr.mxu0 0.0
        %346 = vmatpush1.msra.mxu0 0.0
        %347 = vmatprep.subr.mxu0 0.0
        %348 = vmatpush1.msra.mxu0 0.0
        %349 = vmatprep.subr.mxu0 0.0
        %350 = vmatpush1.msra.mxu0 0.0
        %351 = vmatprep.subr.mxu0 0.0
        %352 = vmatpush1.msra.mxu0 0.0
        %353 = vmatprep.subr.mxu0 0.0
        %354 = vmatpush1.msra.mxu0 0.0
        %355 = vmatprep.subr.mxu0 0.0
        %356 = vmatpush1.msra.mxu0 0.0
        %357 = vmatprep.subr.mxu0 0.0
        %358 = vmatpush1.msra.mxu0 0.0
        %359 = vmatprep.subr.mxu0 0.0
        %360 = vmatpush1.msra.mxu0 0.0
        %361 = vmatprep.subr.mxu0 0.0
        %362 = vmatpush1.msra.mxu0 0.0
        %363 = vmatprep.subr.mxu0 0.0
        %364 = vmatpush1.msra.mxu0 0.0
        %365 = vmatprep.subr.mxu0 0.0
        %366 = vmatpush1.msra.mxu0 0.0
        %367 = vmatprep.subr.mxu0 0.0
        %368 = vmatpush1.msra.mxu0 0.0
        %369 = vmatprep.subr.mxu0 0.0
        %370 = vmatpush1.msra.mxu0 0.0
        %371 = vmatprep.subr.mxu0 0.0
        %372 = vmatpush1.msra.mxu0 0.0
        %373 = vmatprep.subr.mxu0 0.0
        %374 = vmatpush1.msra.mxu0 0.0
        %375 = vmatprep.subr.mxu0 0.0
        %376 = vmatpush1.msra.mxu0 0.0
        %377 = vmatprep.subr.mxu0 0.0
        %378 = vmatpush1.msra.mxu0 0.0
        %379 = vmatprep.subr.mxu0 0.0
        %380 = vmatpush1.msra.mxu0 0.0
        %381 = vmatprep.subr.mxu0 0.0
        %382 = vmatpush1.msra.mxu0 0.0
        %383 = vmatprep.subr.mxu0 0.0
        %384 = vmatpush1.msra.mxu0 0.0
        %385 = vmatprep.subr.mxu0 0.0
        %386 = vmatpush1.msra.mxu0 0.0
        %387 = vmatprep.subr.mxu0 0.0
        %388 = vmatpush1.msra.mxu0 0.0
        %389 = vmatprep.subr.mxu0 0.0
        %390 = vmatpush1.msra.mxu0 0.0
        %391 = vmatprep.subr.mxu0 0.0
        %392 = vmatpush1.msra.mxu0 0.0
        %393 = vmatprep.mubr.f32.mxu0 0.0
        %394 = vmatmul.mubr.f32.gmra.mrb[0].mxu0 %v282
        %v395 = vpop.f32.mrb[0].mxu0
        %v396 = vadd.f32 0.0, %v395
        %v397 = vpop.f32.mrb[0].mxu0
        %398 = vmatprep.mubr.f32.mxu0 0.0
        %399 = vmatmul.mubr.f32.gmra.mrb[0].mxu0 %v285
        %v400 = vpop.f32.mrb[0].mxu0
        %v401 = vadd.f32 0.0, %v400
        %v402 = vpop.f32.mrb[0].mxu0
        %403 = vmatprep.mubr.f32.mxu0 0.0
        %404 = vmatmul.mubr.f32.gmra.mrb[0].mxu0 %v288
        %v405 = vpop.f32.mrb[0].mxu0
        %v406 = vadd.f32 0.0, %v405
        %v407 = vpop.f32.mrb[0].mxu0
        %408 = vmatprep.mubr.f32.mxu0 0.0
        %409 = vmatmul.mubr.f32.gmra.mrb[0].mxu0 %v291
        %v410 = vpop.f32.mrb[0].mxu0
        %v411 = vadd.f32 0.0, %v410
        %v412 = vpop.f32.mrb[0].mxu0
        %413 = vmatprep.mubr.f32.mxu0 0.0
        %414 = vmatmul.mubr.f32.gmra.mrb[0].mxu0 %v294
        %v415 = vpop.f32.mrb[0].mxu0
        %v416 = vadd.f32 0.0, %v415
        %v417 = vpop.f32.mrb[0].mxu0
        %418 = vmatprep.mubr.f32.mxu0 0.0
        %419 = vmatmul.mubr.f32.gmra.mrb[0].mxu0 %v297
        %v420 = vpop.f32.mrb[0].mxu0
        %v421 = vadd.f32 0.0, %v420
        %v422 = vpop.f32.mrb[0].mxu0
        %423 = vmatprep.mubr.f32.mxu0 0.0
        %424 = vmatmul.mubr.f32.gmra.mrb[0].mxu0 %v300
        %v425 = vpop.f32.mrb[0].mxu0
        %v426 = vadd.f32 0.0, %v425
        %v427 = vpop.f32.mrb[0].mxu0
        %428 = vmatprep.mubr.f32.mxu0 0.0
        %429 = vmatmul.mubr.f32.gmra.mrb[0].mxu0 %v303
        %v430 = vpop.f32.mrb[0].mxu0
        %v431 = vadd.f32 0.0, %v430
        %v432 = vpop.f32.mrb[0].mxu0
        %433 = vmatprep.mubr.f32.mxu0 0.0
        %434 = vmatmul.mubr.f32.gmra.mrb[0].mxu0 %v306
        %v435 = vpop.f32.mrb[0].mxu0
        %v436 = vadd.f32 0.0, %v435
        %v437 = vpop.f32.mrb[0].mxu0
        %438 = vmatprep.mubr.f32.mxu0 0.0
        %439 = vmatmul.mubr.f32.gmra.mrb[0].mxu0 %v309
        %v440 = vpop.f32.mrb[0].mxu0
        %v441 = vadd.f32 0.0, %v440
        %v442 = vpop.f32.mrb[0].mxu0
        %443 = vmatprep.mubr.f32.mxu0 0.0
        %444 = vmatmul.mubr.f32.gmra.mrb[0].mxu0 %v312
        %v445 = vpop.f32.mrb[0].mxu0
        %v446 = vadd.f32 0.0, %v445
        %v447 = vpop.f32.mrb[0].mxu0
        %448 = vmatprep.mubr.f32.mxu0 0.0
        %449 = vmatmul.mubr.f32.gmra.mrb[0].mxu0 %v315
        %v450 = vpop.f32.mrb[0].mxu0
        %v451 = vadd.f32 0.0, %v450
        %v452 = vpop.f32.mrb[0].mxu0
        %453 = vmatprep.mubr.f32.mxu0 0.0
        %454 = vmatmul.mubr.f32.gmra.mrb[0].mxu0 %v318
        %v455 = vpop.f32.mrb[0].mxu0
        %v456 = vadd.f32 0.0, %v455
        %v457 = vpop.f32.mrb[0].mxu0
        %458 = vmatprep.mubr.f32.mxu0 0.0
        %459 = vmatmul.mubr.f32.gmra.mrb[0].mxu0 %v321
        %v460 = vpop.f32.mrb[0].mxu0
        %v461 = vadd.f32 0.0, %v460
        %v462 = vpop.f32.mrb[0].mxu0
        %463 = vmatprep.mubr.f32.mxu0 0.0
        %464 = vmatmul.mubr.f32.gmra.mrb[0].mxu0 %v324
        %v465 = vpop.f32.mrb[0].mxu0
        %v466 = vadd.f32 0.0, %v465
        %v467 = vpop.f32.mrb[0].mxu0
        %468 = vmatprep.mubr.f32.mxu0 0.0
        %469 = vmatmul.mubr.f32.gmra.mrb[0].mxu0 %v327
        %v470 = vpop.f32.mrb[0].mxu0
        %v471 = vadd.f32 0.0, %v470
        %v472 = vpop.f32.mrb[0].mxu0
        %473 = vdwg.mxu0
        %v474 = vmul.f32 %v396, 2.0
        %v475 = vmul.f32 %v401, 2.0
        %v476 = vmul.f32 %v406, 2.0
        %v477 = vmul.f32 %v411, 2.0
        %v478 = vmul.f32 %v416, 2.0
        %v479 = vmul.f32 %v421, 2.0
        %v480 = vmul.f32 %v426, 2.0
        %v481 = vmul.f32 %v431, 2.0
        %v482 = vmul.f32 %v436, 2.0
        %v483 = vmul.f32 %v441, 2.0
        %v484 = vmul.f32 %v446, 2.0
        %v485 = vmul.f32 %v451, 2.0
        %v486 = vmul.f32 %v456, 2.0
        %v487 = vmul.f32 %v461, 2.0
        %v488 = vmul.f32 %v466, 2.0
        %v489 = vmul.f32 %v471, 2.0
        %491 = vset.pattern.permute.xlu0 0
        %492 = vperm.xlu0 %491, %v264
        %v493 = vpop.permute.xlu0 %492
        %496 = vset.pattern.permute.xlu0 0
        %497 = vperm.xlu0 %496, %v265
        %v498 = vpop.permute.xlu0 %497
        %501 = vset.pattern.permute.xlu0 0
        %502 = vperm.xlu0 %501, %v266
        %v503 = vpop.permute.xlu0 %502
        %506 = vset.pattern.permute.xlu0 0
        %507 = vperm.xlu0 %506, %v267
        %v508 = vpop.permute.xlu0 %507
        %511 = vset.pattern.permute.xlu0 0
        %512 = vperm.xlu0 %511, %v268
        %v513 = vpop.permute.xlu0 %512
        %516 = vset.pattern.permute.xlu0 0
        %517 = vperm.xlu0 %516, %v269
        %v518 = vpop.permute.xlu0 %517
        %521 = vset.pattern.permute.xlu0 0
        %522 = vperm.xlu0 %521, %v270
        %v523 = vpop.permute.xlu0 %522
        %526 = vset.pattern.permute.xlu0 0
        %527 = vperm.xlu0 %526, %v271
        %v528 = vpop.permute.xlu0 %527
        %531 = vset.pattern.permute.xlu0 0
        %532 = vperm.xlu0 %531, %v272
        %v533 = vpop.permute.xlu0 %532
        %536 = vset.pattern.permute.xlu0 0
        %537 = vperm.xlu0 %536, %v273
        %v538 = vpop.permute.xlu0 %537
        %541 = vset.pattern.permute.xlu0 0
        %542 = vperm.xlu0 %541, %v274
        %v543 = vpop.permute.xlu0 %542
        %546 = vset.pattern.permute.xlu0 0
        %547 = vperm.xlu0 %546, %v275
        %v548 = vpop.permute.xlu0 %547
        %551 = vset.pattern.permute.xlu0 0
        %552 = vperm.xlu0 %551, %v276
        %v553 = vpop.permute.xlu0 %552
        %556 = vset.pattern.permute.xlu0 0
        %557 = vperm.xlu0 %556, %v277
        %v558 = vpop.permute.xlu0 %557
        %561 = vset.pattern.permute.xlu0 0
        %562 = vperm.xlu0 %561, %v278
        %v563 = vpop.permute.xlu0 %562
        %566 = vset.pattern.permute.xlu0 0
        %567 = vperm.xlu0 %566, %v279
        %v568 = vpop.permute.xlu0 %567
        %v570 = vsub.f32 %v493, %v474
        %v571 = vsub.f32 %v498, %v475
        %v572 = vsub.f32 %v503, %v476
        %v573 = vsub.f32 %v508, %v477
        %v574 = vsub.f32 %v513, %v478
        %v575 = vsub.f32 %v518, %v479
        %v576 = vsub.f32 %v523, %v480
        %v577 = vsub.f32 %v528, %v481
        %v578 = vsub.f32 %v533, %v482
        %v579 = vsub.f32 %v538, %v483
        %v580 = vsub.f32 %v543, %v484
        %v581 = vsub.f32 %v548, %v485
        %v582 = vsub.f32 %v553, %v486
        %v583 = vsub.f32 %v558, %v487
        %v584 = vsub.f32 %v563, %v488
        %v585 = vsub.f32 %v568, %v489
        %v586 = vmin.f32 %v570, %v574
        %v587 = vmin.f32 %v571, %v575
        %v588 = vmin.f32 %v572, %v576
        %v589 = vmin.f32 %v573, %v577
        %v590 = vmin.f32 %v586, %v578
        %v591 = vmin.f32 %v587, %v579
        %v592 = vmin.f32 %v588, %v580
        %v593 = vmin.f32 %v589, %v581
        %v594 = vmin.f32 %v590, %v582
        %v595 = vmin.f32 %v591, %v583
        %v596 = vmin.f32 %v592, %v584
        %v597 = vmin.f32 %v593, %v585
        %v598 = vmin.f32 %v594, %v595
        %v599 = vmin.f32 %v596, %v597
        %v600 = vmin.f32 %v598, %v599
        %v601 = vrot.slane %v600, 4
        %v602 = vmin.f32 %v600, %v601
        %v603 = vrot.slane %v602, 2
        %v604 = vmin.f32 %v602, %v603
        %v605 = vrot.slane %v604, 1
        %v606 = vmin.f32 %v604, %v605
        %v607 = vlaneseq
        %v608 = vshrl.u32 %v607, 7
        %v609 = vadd.s32 %v608, 8
        %v610 = vadd.s32 %v608, 16
        %v611 = vadd.s32 %v608, 24
        %v612 = vadd.s32 %v608, 32
        %v613 = vadd.s32 %v608, 40
        %v614 = vadd.s32 %v608, 48
        %v615 = vadd.s32 %v608, 56
        %v616 = vadd.s32 %v608, 64
        %v617 = vadd.s32 %v608, 72
        %v618 = vadd.s32 %v608, 80
        %v619 = vadd.s32 %v608, 88
        %v620 = vadd.s32 %v608, 96
        %v621 = vadd.s32 %v608, 104
        %v622 = vadd.s32 %v608, 112
        %v623 = vadd.s32 %v608, 120
        %vm624 = vcmp.eq.f32.partialorder %v570, %v606
        %vm625 = vcmp.eq.f32.partialorder %v571, %v606
        %vm626 = vcmp.eq.f32.partialorder %v572, %v606
        %vm627 = vcmp.eq.f32.partialorder %v573, %v606
        %vm628 = vcmp.eq.f32.partialorder %v574, %v606
        %vm629 = vcmp.eq.f32.partialorder %v575, %v606
        %vm630 = vcmp.eq.f32.partialorder %v576, %v606
        %vm631 = vcmp.eq.f32.partialorder %v577, %v606
        %vm632 = vcmp.eq.f32.partialorder %v578, %v606
        %vm633 = vcmp.eq.f32.partialorder %v579, %v606
        %vm634 = vcmp.eq.f32.partialorder %v580, %v606
        %vm635 = vcmp.eq.f32.partialorder %v581, %v606
        %vm636 = vcmp.eq.f32.partialorder %v582, %v606
        %vm637 = vcmp.eq.f32.partialorder %v583, %v606
        %vm638 = vcmp.eq.f32.partialorder %v584, %v606
        %vm639 = vcmp.eq.f32.partialorder %v585, %v606
        %v640 = vsel %vm624, %v608, 128
        %v641 = vsel %vm625, %v609, 128
        %v642 = vsel %vm626, %v610, 128
        %v643 = vsel %vm627, %v611, 128
        %v644 = vsel %vm628, %v612, 128
        %v645 = vsel %vm629, %v613, 128
        %v646 = vsel %vm630, %v614, 128
        %v647 = vsel %vm631, %v615, 128
        %v648 = vsel %vm632, %v616, 128
        %v649 = vsel %vm633, %v617, 128
        %v650 = vsel %vm634, %v618, 128
        %v651 = vsel %vm635, %v619, 128
        %v652 = vsel %vm636, %v620, 128
        %v653 = vsel %vm637, %v621, 128
        %v654 = vsel %vm638, %v622, 128
        %v655 = vsel %vm639, %v623, 128
        %vm656 = vcmp.lt.s32.totalorder %v640, %v644
        %v657 = vsel %vm656, %v640, %v644
        %vm658 = vcmp.lt.s32.totalorder %v641, %v645
        %v659 = vsel %vm658, %v641, %v645
        %vm660 = vcmp.lt.s32.totalorder %v642, %v646
        %v661 = vsel %vm660, %v642, %v646
        %vm662 = vcmp.lt.s32.totalorder %v643, %v647
        %v663 = vsel %vm662, %v643, %v647
        %vm664 = vcmp.lt.s32.totalorder %v657, %v648
        %v665 = vsel %vm664, %v657, %v648
        %vm666 = vcmp.lt.s32.totalorder %v659, %v649
        %v667 = vsel %vm666, %v659, %v649
        %vm668 = vcmp.lt.s32.totalorder %v661, %v650
        %v669 = vsel %vm668, %v661, %v650
        %vm670 = vcmp.lt.s32.totalorder %v663, %v651
        %v671 = vsel %vm670, %v663, %v651
        %vm672 = vcmp.lt.s32.totalorder %v665, %v652
        %v673 = vsel %vm672, %v665, %v652
        %vm674 = vcmp.lt.s32.totalorder %v667, %v653
        %v675 = vsel %vm674, %v667, %v653
        %vm676 = vcmp.lt.s32.totalorder %v669, %v654
        %v677 = vsel %vm676, %v669, %v654
        %vm678 = vcmp.lt.s32.totalorder %v671, %v655
        %v679 = vsel %vm678, %v671, %v655
        %vm680 = vcmp.lt.s32.totalorder %v673, %v675
        %v681 = vsel %vm680, %v673, %v675
        %vm682 = vcmp.lt.s32.totalorder %v677, %v679
        %v683 = vsel %vm682, %v677, %v679
        %vm684 = vcmp.lt.s32.totalorder %v681, %v683
        %v685 = vsel %vm684, %v681, %v683
        %v686 = vrot.slane %v685, 4
        %vm687 = vcmp.lt.s32.totalorder %v685, %v686
        %v688 = vsel %vm687, %v685, %v686
        %v689 = vrot.slane %v688, 2
        %vm690 = vcmp.lt.s32.totalorder %v688, %v689
        %v691 = vsel %vm690, %v688, %v689
        %v692 = vrot.slane %v691, 1
        %vm693 = vcmp.lt.s32.totalorder %v691, %v692
        %v694 = vsel %vm693, %v691, %v692
        %vm695 = vcmp.eq.s32.totalorder %v608, %v694
        %vm696 = vcmp.eq.s32.totalorder %v609, %v694
        %vm697 = vcmp.eq.s32.totalorder %v610, %v694
        %vm698 = vcmp.eq.s32.totalorder %v611, %v694
        %vm699 = vcmp.eq.s32.totalorder %v612, %v694
        %vm700 = vcmp.eq.s32.totalorder %v613, %v694
        %vm701 = vcmp.eq.s32.totalorder %v614, %v694
        %vm702 = vcmp.eq.s32.totalorder %v615, %v694
        %vm703 = vcmp.eq.s32.totalorder %v616, %v694
        %vm704 = vcmp.eq.s32.totalorder %v617, %v694
        %vm705 = vcmp.eq.s32.totalorder %v618, %v694
        %vm706 = vcmp.eq.s32.totalorder %v619, %v694
        %vm707 = vcmp.eq.s32.totalorder %v620, %v694
        %vm708 = vcmp.eq.s32.totalorder %v621, %v694
        %vm709 = vcmp.eq.s32.totalorder %v622, %v694
        %vm710 = vcmp.eq.s32.totalorder %v623, %v694
        %v711 = vsel %vm695, 1, 0
        %v712 = vsel %vm696, 1, 0
        %v713 = vsel %vm697, 1, 0
        %v714 = vsel %vm698, 1, 0
        %v715 = vsel %vm699, 1, 0
        %v716 = vsel %vm700, 1, 0
        %v717 = vsel %vm701, 1, 0
        %v718 = vsel %vm702, 1, 0
        %v719 = vsel %vm703, 1, 0
        %v720 = vsel %vm704, 1, 0
        %v721 = vsel %vm705, 1, 0
        %v722 = vsel %vm706, 1, 0
        %v723 = vsel %vm707, 1, 0
        %v724 = vsel %vm708, 1, 0
        %v725 = vsel %vm709, 1, 0
        %v726 = vsel %vm710, 1, 0
        %v727 = vcvt.s32.f32 %v711
        %v728 = vcvt.s32.f32 %v712
        %v729 = vcvt.s32.f32 %v713
        %v730 = vcvt.s32.f32 %v714
        %v731 = vcvt.s32.f32 %v715
        %v732 = vcvt.s32.f32 %v716
        %v733 = vcvt.s32.f32 %v717
        %v734 = vcvt.s32.f32 %v718
        %v735 = vcvt.s32.f32 %v719
        %v736 = vcvt.s32.f32 %v720
        %v737 = vcvt.s32.f32 %v721
        %v738 = vcvt.s32.f32 %v722
        %v739 = vcvt.s32.f32 %v723
        %v740 = vcvt.s32.f32 %v724
        %v741 = vcvt.s32.f32 %v725
        %v742 = vcvt.s32.f32 %v726
        %s743 = smul.u32 %s24, 128
        %v744 = vlaneseq
        %v745 = vand.u32 %v744, 127
        %v746 = vstv %s743
        %v747 = vadd.s32 %v746, %v745
        %vm748 = vcmp.lt.s32.totalorder %v747, 16
        %v749 = vsel %vm748, 1, 0
        %vm750 = vcmp.eq.s32.totalorder %v749, 1
        %v751 = vsel %vm750, %v727, 0.0
        %v752 = vsel %vm750, %v728, 0.0
        %v753 = vsel %vm750, %v729, 0.0
        %v754 = vsel %vm750, %v730, 0.0
        %v755 = vsel %vm750, %v731, 0.0
        %v756 = vsel %vm750, %v732, 0.0
        %v757 = vsel %vm750, %v733, 0.0
        %v758 = vsel %vm750, %v734, 0.0
        %v759 = vsel %vm750, %v735, 0.0
        %v760 = vsel %vm750, %v736, 0.0
        %v761 = vsel %vm750, %v737, 0.0
        %v762 = vsel %vm750, %v738, 0.0
        %v763 = vsel %vm750, %v739, 0.0
        %v764 = vsel %vm750, %v740, 0.0
        %v765 = vsel %vm750, %v741, 0.0
        %v766 = vsel %vm750, %v742, 0.0
        %767 = vxpose.xlu0.b32.start [1/16] %v248, 128
        %768 = vxpose.xlu0.b32.cont [2/16] %v249, 128
        %769 = vxpose.xlu0.b32.cont [3/16] %v250, 128
        %770 = vxpose.xlu0.b32.cont [4/16] %v251, 128
        %771 = vxpose.xlu0.b32.cont [5/16] %v252, 128
        %772 = vxpose.xlu0.b32.cont [6/16] %v253, 128
        %773 = vxpose.xlu0.b32.cont [7/16] %v254, 128
        %774 = vxpose.xlu0.b32.cont [8/16] %v255, 128
        %775 = vxpose.xlu0.b32.cont [9/16] %v256, 128
        %776 = vxpose.xlu0.b32.cont [10/16] %v257, 128
        %777 = vxpose.xlu0.b32.cont [11/16] %v258, 128
        %778 = vxpose.xlu0.b32.cont [12/16] %v259, 128
        %779 = vxpose.xlu0.b32.cont [13/16] %v260, 128
        %780 = vxpose.xlu0.b32.cont [14/16] %v261, 128
        %781 = vxpose.xlu0.b32.cont [15/16] %v262, 128
        %782 = vxpose.xlu0.b32.end [16/16] %v263, 128
        %v783 = vpop.trf.xlu0
        %v784 = vpop.trf.xlu0
        %v785 = vpop.trf.xlu0
        %v786 = vpop.trf.xlu0
        %v787 = vpop.trf.xlu0
        %v788 = vpop.trf.xlu0
        %v789 = vpop.trf.xlu0
        %v790 = vpop.trf.xlu0
        %v791 = vpop.trf.xlu0
        %v792 = vpop.trf.xlu0
        %v793 = vpop.trf.xlu0
        %v794 = vpop.trf.xlu0
        %v795 = vpop.trf.xlu0
        %v796 = vpop.trf.xlu0
        %v797 = vpop.trf.xlu0
        %v798 = vpop.trf.xlu0
        %799 = vmatprep.subr.mxu0 0.0
        %800 = vmatpush1.msra.mxu0 %v751
        %801 = vmatprep.subr.mxu0 0.0
        %802 = vmatpush1.msra.mxu0 %v752
        %803 = vmatprep.subr.mxu0 0.0
        %804 = vmatpush1.msra.mxu0 %v753
        %805 = vmatprep.subr.mxu0 0.0
        %806 = vmatpush1.msra.mxu0 %v754
        %807 = vmatprep.subr.mxu0 0.0
        %808 = vmatpush1.msra.mxu0 %v755
        %809 = vmatprep.subr.mxu0 0.0
        %810 = vmatpush1.msra.mxu0 %v756
        %811 = vmatprep.subr.mxu0 0.0
        %812 = vmatpush1.msra.mxu0 %v757
        %813 = vmatprep.subr.mxu0 0.0
        %814 = vmatpush1.msra.mxu0 %v758
        %815 = vmatprep.subr.mxu0 0.0
        %816 = vmatpush1.msra.mxu0 %v759
        %817 = vmatprep.subr.mxu0 0.0
        %818 = vmatpush1.msra.mxu0 %v760
        %819 = vmatprep.subr.mxu0 0.0
        %820 = vmatpush1.msra.mxu0 %v761
        %821 = vmatprep.subr.mxu0 0.0
        %822 = vmatpush1.msra.mxu0 %v762
        %823 = vmatprep.subr.mxu0 0.0
        %824 = vmatpush1.msra.mxu0 %v763
        %825 = vmatprep.subr.mxu0 0.0
        %826 = vmatpush1.msra.mxu0 %v764
        %827 = vmatprep.subr.mxu0 0.0
        %828 = vmatpush1.msra.mxu0 %v765
        %829 = vmatprep.subr.mxu0 0.0
        %830 = vmatpush1.msra.mxu0 %v766
        %831 = vmatprep.subr.mxu0 0.0
        %832 = vmatpush1.msra.mxu0 0.0
        %833 = vmatprep.subr.mxu0 0.0
        %834 = vmatpush1.msra.mxu0 0.0
        %835 = vmatprep.subr.mxu0 0.0
        %836 = vmatpush1.msra.mxu0 0.0
        %837 = vmatprep.subr.mxu0 0.0
        %838 = vmatpush1.msra.mxu0 0.0
        %839 = vmatprep.subr.mxu0 0.0
        %840 = vmatpush1.msra.mxu0 0.0
        %841 = vmatprep.subr.mxu0 0.0
        %842 = vmatpush1.msra.mxu0 0.0
        %843 = vmatprep.subr.mxu0 0.0
        %844 = vmatpush1.msra.mxu0 0.0
        %845 = vmatprep.subr.mxu0 0.0
        %846 = vmatpush1.msra.mxu0 0.0
        %847 = vmatprep.subr.mxu0 0.0
        %848 = vmatpush1.msra.mxu0 0.0
        %849 = vmatprep.subr.mxu0 0.0
        %850 = vmatpush1.msra.mxu0 0.0
        %851 = vmatprep.subr.mxu0 0.0
        %852 = vmatpush1.msra.mxu0 0.0
        %853 = vmatprep.subr.mxu0 0.0
        %854 = vmatpush1.msra.mxu0 0.0
        %855 = vmatprep.subr.mxu0 0.0
        %856 = vmatpush1.msra.mxu0 0.0
        %857 = vmatprep.subr.mxu0 0.0
        %858 = vmatpush1.msra.mxu0 0.0
        %859 = vmatprep.subr.mxu0 0.0
        %860 = vmatpush1.msra.mxu0 0.0
        %861 = vmatprep.subr.mxu0 0.0
        %862 = vmatpush1.msra.mxu0 0.0
        %863 = vmatprep.mubr.f32.mxu0 0.0
        %864 = vmatmul.mubr.f32.gmra.mrb[0].mxu0 %v783
        %v865 = vpop.f32.mrb[0].mxu0
        %v866 = vadd.f32 0.0, %v865
        %v867 = vpop.f32.mrb[0].mxu0
        %868 = vmatprep.mubr.f32.mxu0 0.0
        %869 = vmatmul.mubr.f32.gmra.mrb[0].mxu0 %v784
        %v870 = vpop.f32.mrb[0].mxu0
        %v871 = vadd.f32 0.0, %v870
        %v872 = vpop.f32.mrb[0].mxu0
        %873 = vmatprep.mubr.f32.mxu0 0.0
        %874 = vmatmul.mubr.f32.gmra.mrb[0].mxu0 %v785
        %v875 = vpop.f32.mrb[0].mxu0
        %v876 = vadd.f32 0.0, %v875
        %v877 = vpop.f32.mrb[0].mxu0
        %878 = vmatprep.mubr.f32.mxu0 0.0
        %879 = vmatmul.mubr.f32.gmra.mrb[0].mxu0 %v786
        %v880 = vpop.f32.mrb[0].mxu0
        %v881 = vadd.f32 0.0, %v880
        %v882 = vpop.f32.mrb[0].mxu0
        %883 = vdwg.mxu0
        %884 = vst [vmem:[%s215] sm:$0xff] %v866
        %885 = vst [vmem:[%s215 + $0x8] sm:$0xff] %v871
        %886 = vst [vmem:[%s215 + $0x10] sm:$0xff] %v876
        %887 = vst [vmem:[%s215 + $0x18] sm:$0xff] %v881
        %888 = vadd.xlane.f32.xlu0 %v751
        %v889 = vpop.xlane.xlu0 %888
        %890 = vadd.xlane.f32.xlu0 %v752
        %v891 = vpop.xlane.xlu0 %890
        %892 = vadd.xlane.f32.xlu0 %v753
        %v893 = vpop.xlane.xlu0 %892
        %894 = vadd.xlane.f32.xlu0 %v754
        %v895 = vpop.xlane.xlu0 %894
        %896 = vadd.xlane.f32.xlu0 %v755
        %v897 = vpop.xlane.xlu0 %896
        %898 = vadd.xlane.f32.xlu0 %v756
        %v899 = vpop.xlane.xlu0 %898
        %900 = vadd.xlane.f32.xlu0 %v757
        %v901 = vpop.xlane.xlu0 %900
        %902 = vadd.xlane.f32.xlu0 %v758
        %v903 = vpop.xlane.xlu0 %902
        %904 = vadd.xlane.f32.xlu0 %v759
        %v905 = vpop.xlane.xlu0 %904
        %906 = vadd.xlane.f32.xlu0 %v760
        %v907 = vpop.xlane.xlu0 %906
        %908 = vadd.xlane.f32.xlu0 %v761
        %v909 = vpop.xlane.xlu0 %908
        %910 = vadd.xlane.f32.xlu0 %v762
        %v911 = vpop.xlane.xlu0 %910
        %912 = vadd.xlane.f32.xlu0 %v763
        %v913 = vpop.xlane.xlu0 %912
        %914 = vadd.xlane.f32.xlu0 %v764
        %v915 = vpop.xlane.xlu0 %914
        %916 = vadd.xlane.f32.xlu0 %v765
        %v917 = vpop.xlane.xlu0 %916
        %918 = vadd.xlane.f32.xlu0 %v766
        %v919 = vpop.xlane.xlu0 %918
        %vm920 = vcmask 7168
        %921 = vst.msk [vmem:[%s243] sm:$0xff] %vm920, %v889
        %922 = vst.msk [vmem:[%s243 + $0x8] sm:$0xff] %vm920, %v891
        %923 = vst.msk [vmem:[%s243 + $0x10] sm:$0xff] %vm920, %v893
        %924 = vst.msk [vmem:[%s243 + $0x18] sm:$0xff] %vm920, %v895
        %925 = vst.msk [vmem:[%s243 + $0x20] sm:$0xff] %vm920, %v897
        %926 = vst.msk [vmem:[%s243 + $0x28] sm:$0xff] %vm920, %v899
        %927 = vst.msk [vmem:[%s243 + $0x30] sm:$0xff] %vm920, %v901
        %928 = vst.msk [vmem:[%s243 + $0x38] sm:$0xff] %vm920, %v903
        %929 = vst.msk [vmem:[%s243 + $0x40] sm:$0xff] %vm920, %v905
        %930 = vst.msk [vmem:[%s243 + $0x48] sm:$0xff] %vm920, %v907
        %931 = vst.msk [vmem:[%s243 + $0x50] sm:$0xff] %vm920, %v909
        %932 = vst.msk [vmem:[%s243 + $0x58] sm:$0xff] %vm920, %v911
        %933 = vst.msk [vmem:[%s243 + $0x60] sm:$0xff] %vm920, %v913
        %934 = vst.msk [vmem:[%s243 + $0x68] sm:$0xff] %vm920, %v915
        %935 = vst.msk [vmem:[%s243 + $0x70] sm:$0xff] %vm920, %v917
        %936 = vst.msk [vmem:[%s243 + $0x78] sm:$0xff] %vm920, %v919
        %s937 = sand.u32 %s111, 1
        %s938 = scalar_lea.sflag [#allocation3], %s937
        %s939 = sand.u32 %s111, 1
        %s940 = smul.addr %s939, 32
        %s941 = scalar_lea.vmem [#allocation2], %s940
        %p942 = scmp.lt.s32.totalorder %s23, 1
        %s943 = scalar_select %p942, %s23, 1
        %p944 = scmp.lt.s32.totalorder %s24, 0
        %s945 = scalar_select %p944, %s24, 0
        %s946 = smul.addr %s945, 16
        %s947 = smul.addr %s943, 16
        %s948 = sadd.s32 %s946, %s947
        %s949 = smul.addr %s948, 8
        %s950 = scalar_lea.vmem %s4, %s949
        // Predicated region
        $region33: #{tpu_custom_call.1} parent=31 // pred_check
          %p951 = pneg %p121
        $region34: #{tpu_custom_call.1} parent=31 // pred_check_branch
          %953 = sbr.rel (%p951) target = $region36
        $region35: #{tpu_custom_call.1} parent=31 // pred_region
          %s955 = ssub.s32 512, 512
          %956 = vsyncadd %s938, %s955
          %s957 = smul.addr %s23, 4
          %s958 = sadd.s32 %s24, %s957
          %s959 = smul.addr %s958, 128
          %s960 = scalar_lea.hbm %s3, %s959
          %s961 = sshll.u32 %s941, 4
          %s962 = int_to_ptr.vmem [resolvable:$true] %s961
          %967 = dma.vmem_to_hbm [thread:$0]  %s962, 512, %s960, %s938, 128, 128, 8
        $region36: #{tpu_custom_call.1} parent=31 // pred_fallthru
          _
        // Predicated region
        $region37: #{tpu_custom_call.1} parent=31 // pred_check
          %p968 = pneg %p149
        $region38: #{tpu_custom_call.1} parent=31 // pred_check_branch
          %970 = sbr.rel (%p968) target = $region40
        $region39: #{tpu_custom_call.1} parent=31 // pred_region
          _
        $region40: #{tpu_custom_call.1} parent=31 // pred_fallthru
          _
      $region32: #{tpu_custom_call.1} parent=5 // pred_fallthru
        _
      %p971 = scmp.le.s32.totalorder 2, %s14
      // Predicated region
      $region41: #{tpu_custom_call.1} parent=5 // pred_check
        %p972 = pneg %p971
      $region42: #{tpu_custom_call.1} parent=5 // pred_check_branch
        %974 = sbr.rel (%p972) target = $region44
      $region43: #{tpu_custom_call.1} parent=5 // pred_region
        %s975 = ssub.s32 %s14, 2
        // Predicated region
        $region45: #{tpu_custom_call.1} parent=43 // pred_check
          %p976 = pneg %p127
        $region46: #{tpu_custom_call.1} parent=43 // pred_check_branch
          %978 = sbr.rel (%p976) target = $region48
        $region47: #{tpu_custom_call.1} parent=43 // pred_region
          %s979 = sand.u32 %s112, 1
          %s980 = scalar_lea.sflag [#allocation3], %s979
          %s981 = sand.u32 %s112, 1
          %s982 = smul.addr %s981, 32
          %s983 = scalar_lea.vmem [#allocation2], %s982
          %984 = dma.done %s980, 512
        $region48: #{tpu_custom_call.1} parent=43 // pred_fallthru
          _
        // Predicated region
        $region49: #{tpu_custom_call.1} parent=43 // pred_check
          %p985 = pneg %p155
        $region50: #{tpu_custom_call.1} parent=43 // pred_check_branch
          %987 = sbr.rel (%p985) target = $region52
        $region51: #{tpu_custom_call.1} parent=43 // pred_region
          %p988 = scmp.lt.s32.totalorder %s25, 1
          %s989 = scalar_select %p988, %s25, 1
          %p990 = scmp.lt.s32.totalorder %s26, 0
          %s991 = scalar_select %p990, %s26, 0
          %s992 = smul.addr %s991, 16
          %s993 = smul.addr %s989, 16
          %s994 = sadd.s32 %s992, %s993
          %s995 = smul.addr %s994, 8
          %s996 = scalar_lea.vmem %s4, %s995
        $region52: #{tpu_custom_call.1} parent=43 // pred_fallthru
          _
      $region44: #{tpu_custom_call.1} parent=5 // pred_fallthru
        _
    $region6: #{tpu_custom_call.1} parent=1 // loop_footer
      %s18 = sadd.s32 1, %s14
    $region7: #{tpu_custom_call.1} parent=1 // loop_footer_branch
      %13 = sbr.rel target = $region3
    $region8: #{tpu_custom_call.1} parent=1 // loop_exit
      _
    %997 = vsyncpa [#allocation3], 1
    %s998 = scalar_lea.sflag [#allocation3], 1
    %999 = vsyncpa %s998, 1

</llo_original>
